<compile_context>
chip_gen: v6e
topology: v6e:2x2x1
jax: 0.10.0
libtpu: 0.0.40
codegen_flags: <defaults>
</compile_context>

<pallas_src>
import math

import jax
import jax.numpy as jnp
from jax import lax
from jax.experimental import pallas as pl
from jax.experimental.pallas import tpu as pltpu

_L2_EPS = 1e-12   # F.normalize default eps
_BN_EPS = 1e-5    # nn.BatchNorm1d default eps


def _fused_decoder_kernel(adj_ref, z_ref, *args):
    """Fused conv_first -> [conv_block_i] -> conv_last, all resident in VMEM.

    Ref order: adj, z, W_0..W_{L-1}, stacked biases, out.
    """
    out_ref = args[-1]
    b_all_ref = args[-2]
    w_refs = args[:-2]
    num_layers = len(w_refs)

    B, N, _ = adj_ref.shape

    # Fold add_self into the adjacency ONCE: A' = adj + I (reused by all layers).
    eye = (lax.broadcasted_iota(jnp.int32, (N, N), 0)
           == lax.broadcasted_iota(jnp.int32, (N, N), 1)).astype(jnp.float32)
    a = adj_ref[...] + eye                       # (B, N, N)

    b_all = b_all_ref[...]                       # (L, max_dout), zero padded
    x = z_ref[...]                               # (B, N, D_in)

    # TODO(synk): matmul inputs kept f32 for exact parity with the torch module;
    # cast a/x/W to bf16 (f32 accumulation) for more MXU throughput on v6e/v7x.
    for li, w_ref in enumerate(w_refs):
        d_out = w_ref.shape[1]

        # y = (adj + I) @ x : unrolled per-batch 2-D dots, concatenated so the
        # subsequent weight matmul sees one (B*N, D_in) operand (MXU rows).
        rows = [jnp.dot(a[bi], x[bi], preferred_element_type=jnp.float32)
                for bi in range(B)]
        y = jnp.concatenate(rows, axis=0)        # (B*N, D_in)

        # y = y @ W + b
        y = jnp.dot(y, w_ref[...], preferred_element_type=jnp.float32)
        y = y + b_all[li:li + 1, :d_out]         # (1, d_out) broadcast

        # F.normalize(p=2, dim=-1): reciprocal-multiply on the EUP slot.
        norm = jnp.sqrt(jnp.sum(y * y, axis=-1, keepdims=True))
        y = y * pl.reciprocal(jnp.maximum(norm, _L2_EPS), approx=True)

        if li < num_layers - 1:
            # ReLU + BatchNorm1d(num_nodes): stats per node over (batch, feat),
            # reusing the centered tensor for both the variance and the output.
            y = jnp.maximum(y, 0.0)
            y3 = y.reshape(B, N, d_out)
            mean = jnp.mean(y3, axis=(0, 2), keepdims=True)
            centered = y3 - mean
            var = jnp.mean(centered * centered, axis=(0, 2), keepdims=True)
            x = centered * lax.rsqrt(var + _BN_EPS)        # (B, N, d_out)
        else:
            # conv_last: plain GraphConv output is what forward() returns.
            out_ref[...] = y.reshape(B, N, d_out)


@jax.jit
def att_decoder_forward(z, adj, params):
    """Returns x_ = conv_last(...) exactly as Att_Decoder_.forward does."""
    # TODO(synk): dropout(p=0.1) inside conv_block is modeled as inference identity.
    B, N, _ = adj.shape
    weights = [w for (w, _) in params]
    d_outs = [w.shape[1] for w in weights]
    emb_dim = d_outs[-1]
    max_dout = max(d_outs)

    # Zero-pad and stack all biases into a single small VMEM block (one DMA).
    b_all = jnp.stack(
        [jnp.pad(b, (0, max_dout - b.shape[0])) for (_, b) in params], axis=0)

    vmem = pl.BlockSpec(memory_space=pltpu.MemorySpace.VMEM)
    n_inputs = 2 + len(weights) + 1

    # TODO(synk): at large N a node-tiled grid (with per-layer HBM round-trips)
    # would be required; full layer fusion needs whole adj/z VMEM residency.
    return pl.pallas_call(
        _fused_decoder_kernel,
        out_shape=jax.ShapeDtypeStruct((B, N, emb_dim), jnp.float32),
        in_specs=[vmem] * n_inputs,
        out_specs=vmem,
        compiler_params=pltpu.CompilerParams(vmem_limit_bytes=32 * 1024 * 1024),
    )(adj, z, *weights, b_all)


def init_params(key, input_dim, hidden_dim, embedding_dim, num_layers):
    """Deterministic kaiming-uniform(fan_in, relu) weights, zero biases."""
    dims = [(input_dim, hidden_dim)]
    dims += [(hidden_dim, hidden_dim)] * (num_layers - 2)
    dims += [(hidden_dim, embedding_dim)]
    params = []
    for (d_in, d_out) in dims:
        key, sub = jax.random.split(key)
        # PyTorch kaiming_uniform_ on a (d_in, d_out) tensor uses fan_in = size(1).
        fan = d_out
        bound = math.sqrt(6.0 / fan)
        w = jax.random.uniform(sub, (d_in, d_out), jnp.float32, -bound, bound)
        b = jnp.zeros((d_out,), jnp.float32)
        params.append((w, b))
    return params


if __name__ == "__main__":
    B, N = 2, 8                 # batch, num nodes
    input_dim, hidden_dim, embedding_dim = 16, 32, 16
    num_layers = 3              # conv_first + 1 conv_block + conv_last

    key = jax.random.PRNGKey(0)
    k_z, k_adj, k_p = jax.random.split(key, 3)

    z = jax.random.normal(k_z, (B, N, input_dim), jnp.float32)
    # symmetric non-negative adjacency with self loops
    a = jax.random.uniform(k_adj, (B, N, N), jnp.float32)
    adj = 0.5 * (a + jnp.swapaxes(a, 1, 2)) + jnp.eye(N, dtype=jnp.float32)[None]

    params = init_params(k_p, input_dim, hidden_dim, embedding_dim, num_layers)

    out = att_decoder_forward(z, adj, params)
    jax.block_until_ready(out)
    assert out.shape == (B, N, embedding_dim)
    assert bool(jnp.all(jnp.isfinite(out)))
    print("KERNEL_OK")
</pallas_src>

<mosaic_0001>
module attributes {stable_mosaic.version = 11 : i64} {
  func.func @_fused_decoder_kernel(%arg0: memref<2x8x8xf32, #tpu.memory_space<vmem>>, %arg1: memref<2x8x16xf32, #tpu.memory_space<vmem>>, %arg2: memref<16x32xf32, #tpu.memory_space<vmem>>, %arg3: memref<32x32xf32, #tpu.memory_space<vmem>>, %arg4: memref<32x16xf32, #tpu.memory_space<vmem>>, %arg5: memref<3x32xf32, #tpu.memory_space<vmem>>, %arg6: memref<2x8x16xf32, #tpu.memory_space<vmem>>) attributes {dimension_semantics = [], scalar_prefetch = 0 : i64, scratch_operands = 0 : i64, tpu.core_type = #tpu.core_type<tc>} {
    %0 = tpu.iota {dimensions = array<i32: 0>} : vector<8x8xi32>
    %1 = tpu.iota {dimensions = array<i32: 1>} : vector<8x8xi32>
    %2 = arith.cmpi eq, %0, %1 : vector<8x8xi32>
    %3 = arith.extui %2 : vector<8x8xi1> to vector<8x8xi32>
    %4 = arith.sitofp %3 : vector<8x8xi32> to vector<8x8xf32>
    %c0 = arith.constant 0 : index
    %c0_0 = arith.constant 0 : index
    %c0_1 = arith.constant 0 : index
    %5 = vector.load %arg0[%c0, %c0_0, %c0_1] : memref<2x8x8xf32, #tpu.memory_space<vmem>>, vector<2x8x8xf32>
    %6 = vector.shape_cast %4 : vector<8x8xf32> to vector<1x8x8xf32>
    %7 = vector.broadcast %6 : vector<1x8x8xf32> to vector<2x8x8xf32>
    %8 = arith.addf %5, %7 : vector<2x8x8xf32>
    %c0_2 = arith.constant 0 : index
    %c0_3 = arith.constant 0 : index
    %9 = vector.load %arg5[%c0_2, %c0_3] : memref<3x32xf32, #tpu.memory_space<vmem>>, vector<3x32xf32>
    %c0_4 = arith.constant 0 : index
    %c0_5 = arith.constant 0 : index
    %c0_6 = arith.constant 0 : index
    %10 = vector.load %arg1[%c0_4, %c0_5, %c0_6] : memref<2x8x16xf32, #tpu.memory_space<vmem>>, vector<2x8x16xf32>
    %11 = vector.extract_strided_slice %8 {offsets = [0, 0, 0], sizes = [1, 8, 8], strides = [1, 1, 1]} : vector<2x8x8xf32> to vector<1x8x8xf32>
    %12 = vector.shape_cast %11 : vector<1x8x8xf32> to vector<8x8xf32>
    %13 = vector.extract_strided_slice %10 {offsets = [0, 0, 0], sizes = [1, 8, 16], strides = [1, 1, 1]} : vector<2x8x16xf32> to vector<1x8x16xf32>
    %14 = vector.shape_cast %13 : vector<1x8x16xf32> to vector<8x16xf32>
    %cst = arith.constant dense<0.000000e+00> : vector<8x16xf32>
    %15 = tpu.matmul %12, %14, %cst {dimension_numbers = #tpu.dot_dimension_numbers<[1], [0], [0], [1], [0, 0, 1, 1], [], []>} : vector<8x8xf32>, vector<8x16xf32>, vector<8x16xf32> -> vector<8x16xf32>
    %16 = vector.extract_strided_slice %8 {offsets = [1, 0, 0], sizes = [1, 8, 8], strides = [1, 1, 1]} : vector<2x8x8xf32> to vector<1x8x8xf32>
    %17 = vector.shape_cast %16 : vector<1x8x8xf32> to vector<8x8xf32>
    %18 = vector.extract_strided_slice %10 {offsets = [1, 0, 0], sizes = [1, 8, 16], strides = [1, 1, 1]} : vector<2x8x16xf32> to vector<1x8x16xf32>
    %19 = vector.shape_cast %18 : vector<1x8x16xf32> to vector<8x16xf32>
    %cst_7 = arith.constant dense<0.000000e+00> : vector<8x16xf32>
    %20 = tpu.matmul %17, %19, %cst_7 {dimension_numbers = #tpu.dot_dimension_numbers<[1], [0], [0], [1], [0, 0, 1, 1], [], []>} : vector<8x8xf32>, vector<8x16xf32>, vector<8x16xf32> -> vector<8x16xf32>
    %21 = tpu.concatenate %15, %20 in 0 : vector<8x16xf32>, vector<8x16xf32> -> vector<16x16xf32>
    %c0_8 = arith.constant 0 : index
    %c0_9 = arith.constant 0 : index
    %22 = vector.load %arg2[%c0_8, %c0_9] : memref<16x32xf32, #tpu.memory_space<vmem>>, vector<16x32xf32>
    %cst_10 = arith.constant dense<0.000000e+00> : vector<16x32xf32>
    %23 = tpu.matmul %21, %22, %cst_10 {dimension_numbers = #tpu.dot_dimension_numbers<[1], [0], [0], [1], [0, 0, 1, 1], [], []>} : vector<16x16xf32>, vector<16x32xf32>, vector<16x32xf32> -> vector<16x32xf32>
    %24 = vector.extract_strided_slice %9 {offsets = [0, 0], sizes = [1, 32], strides = [1, 1]} : vector<3x32xf32> to vector<1x32xf32>
    %25 = vector.broadcast %24 : vector<1x32xf32> to vector<16x32xf32>
    %26 = arith.addf %23, %25 : vector<16x32xf32>
    %27 = arith.mulf %26, %26 : vector<16x32xf32>
    %cst_11 = arith.constant dense<0.000000e+00> : vector<16xf32>
    %28 = vector.multi_reduction <add>, %27, %cst_11 [1] : vector<16x32xf32> to vector<16xf32>
    %29 = vector.shape_cast %28 : vector<16xf32> to vector<16x1xf32>
    %30 = math.sqrt %29 : vector<16x1xf32>
    %cst_12 = arith.constant 9.99999996E-13 : f32
    %31 = vector.broadcast %cst_12 : f32 to vector<16x1xf32>
    %32 = arith.maximumf %30, %31 : vector<16x1xf32>
    %33 = tpu.reciprocal %32 {approx = true} : vector<16x1xf32> -> vector<16x1xf32>
    %34 = vector.broadcast %33 : vector<16x1xf32> to vector<16x32xf32>
    %35 = arith.mulf %26, %34 : vector<16x32xf32>
    %cst_13 = arith.constant 0.000000e+00 : f32
    %36 = vector.broadcast %cst_13 : f32 to vector<16x32xf32>
    %37 = arith.maximumf %35, %36 : vector<16x32xf32>
    %38 = vector.shape_cast %37 : vector<16x32xf32> to vector<2x8x32xf32>
    %cst_14 = arith.constant dense<0.000000e+00> : vector<8xf32>
    %39 = vector.multi_reduction <add>, %38, %cst_14 [0, 2] : vector<2x8x32xf32> to vector<8xf32>
    %40 = vector.shape_cast %39 : vector<8xf32> to vector<1x8x1xf32>
    %cst_15 = arith.constant 6.400000e+01 : f32
    %41 = vector.broadcast %cst_15 : f32 to vector<1x8x1xf32>
    %42 = arith.divf %40, %41 : vector<1x8x1xf32>
    %43 = vector.broadcast %42 : vector<1x8x1xf32> to vector<2x8x32xf32>
    %44 = arith.subf %38, %43 : vector<2x8x32xf32>
    %45 = arith.mulf %44, %44 : vector<2x8x32xf32>
    %cst_16 = arith.constant dense<0.000000e+00> : vector<8xf32>
    %46 = vector.multi_reduction <add>, %45, %cst_16 [0, 2] : vector<2x8x32xf32> to vector<8xf32>
    %47 = vector.shape_cast %46 : vector<8xf32> to vector<1x8x1xf32>
    %cst_17 = arith.constant 6.400000e+01 : f32
    %48 = vector.broadcast %cst_17 : f32 to vector<1x8x1xf32>
    %49 = arith.divf %47, %48 : vector<1x8x1xf32>
    %cst_18 = arith.constant 9.99999974E-6 : f32
    %50 = vector.broadcast %cst_18 : f32 to vector<1x8x1xf32>
    %51 = arith.addf %49, %50 : vector<1x8x1xf32>
    %52 = math.rsqrt %51 : vector<1x8x1xf32>
    %53 = vector.broadcast %52 : vector<1x8x1xf32> to vector<2x8x32xf32>
    %54 = arith.mulf %44, %53 : vector<2x8x32xf32>
    %55 = vector.extract_strided_slice %8 {offsets = [0, 0, 0], sizes = [1, 8, 8], strides = [1, 1, 1]} : vector<2x8x8xf32> to vector<1x8x8xf32>
    %56 = vector.shape_cast %55 : vector<1x8x8xf32> to vector<8x8xf32>
    %57 = vector.extract_strided_slice %54 {offsets = [0, 0, 0], sizes = [1, 8, 32], strides = [1, 1, 1]} : vector<2x8x32xf32> to vector<1x8x32xf32>
    %58 = vector.shape_cast %57 : vector<1x8x32xf32> to vector<8x32xf32>
    %cst_19 = arith.constant dense<0.000000e+00> : vector<8x32xf32>
    %59 = tpu.matmul %56, %58, %cst_19 {dimension_numbers = #tpu.dot_dimension_numbers<[1], [0], [0], [1], [0, 0, 1, 1], [], []>} : vector<8x8xf32>, vector<8x32xf32>, vector<8x32xf32> -> vector<8x32xf32>
    %60 = vector.extract_strided_slice %8 {offsets = [1, 0, 0], sizes = [1, 8, 8], strides = [1, 1, 1]} : vector<2x8x8xf32> to vector<1x8x8xf32>
    %61 = vector.shape_cast %60 : vector<1x8x8xf32> to vector<8x8xf32>
    %62 = vector.extract_strided_slice %54 {offsets = [1, 0, 0], sizes = [1, 8, 32], strides = [1, 1, 1]} : vector<2x8x32xf32> to vector<1x8x32xf32>
    %63 = vector.shape_cast %62 : vector<1x8x32xf32> to vector<8x32xf32>
    %cst_20 = arith.constant dense<0.000000e+00> : vector<8x32xf32>
    %64 = tpu.matmul %61, %63, %cst_20 {dimension_numbers = #tpu.dot_dimension_numbers<[1], [0], [0], [1], [0, 0, 1, 1], [], []>} : vector<8x8xf32>, vector<8x32xf32>, vector<8x32xf32> -> vector<8x32xf32>
    %65 = tpu.concatenate %59, %64 in 0 : vector<8x32xf32>, vector<8x32xf32> -> vector<16x32xf32>
    %c0_21 = arith.constant 0 : index
    %c0_22 = arith.constant 0 : index
    %66 = vector.load %arg3[%c0_21, %c0_22] : memref<32x32xf32, #tpu.memory_space<vmem>>, vector<32x32xf32>
    %cst_23 = arith.constant dense<0.000000e+00> : vector<16x32xf32>
    %67 = tpu.matmul %65, %66, %cst_23 {dimension_numbers = #tpu.dot_dimension_numbers<[1], [0], [0], [1], [0, 0, 1, 1], [], []>} : vector<16x32xf32>, vector<32x32xf32>, vector<16x32xf32> -> vector<16x32xf32>
    %68 = vector.extract_strided_slice %9 {offsets = [1, 0], sizes = [1, 32], strides = [1, 1]} : vector<3x32xf32> to vector<1x32xf32>
    %69 = vector.broadcast %68 : vector<1x32xf32> to vector<16x32xf32>
    %70 = arith.addf %67, %69 : vector<16x32xf32>
    %71 = arith.mulf %70, %70 : vector<16x32xf32>
    %cst_24 = arith.constant dense<0.000000e+00> : vector<16xf32>
    %72 = vector.multi_reduction <add>, %71, %cst_24 [1] : vector<16x32xf32> to vector<16xf32>
    %73 = vector.shape_cast %72 : vector<16xf32> to vector<16x1xf32>
    %74 = math.sqrt %73 : vector<16x1xf32>
    %cst_25 = arith.constant 9.99999996E-13 : f32
    %75 = vector.broadcast %cst_25 : f32 to vector<16x1xf32>
    %76 = arith.maximumf %74, %75 : vector<16x1xf32>
    %77 = tpu.reciprocal %76 {approx = true} : vector<16x1xf32> -> vector<16x1xf32>
    %78 = vector.broadcast %77 : vector<16x1xf32> to vector<16x32xf32>
    %79 = arith.mulf %70, %78 : vector<16x32xf32>
    %cst_26 = arith.constant 0.000000e+00 : f32
    %80 = vector.broadcast %cst_26 : f32 to vector<16x32xf32>
    %81 = arith.maximumf %79, %80 : vector<16x32xf32>
    %82 = vector.shape_cast %81 : vector<16x32xf32> to vector<2x8x32xf32>
    %cst_27 = arith.constant dense<0.000000e+00> : vector<8xf32>
    %83 = vector.multi_reduction <add>, %82, %cst_27 [0, 2] : vector<2x8x32xf32> to vector<8xf32>
    %84 = vector.shape_cast %83 : vector<8xf32> to vector<1x8x1xf32>
    %cst_28 = arith.constant 6.400000e+01 : f32
    %85 = vector.broadcast %cst_28 : f32 to vector<1x8x1xf32>
    %86 = arith.divf %84, %85 : vector<1x8x1xf32>
    %87 = vector.broadcast %86 : vector<1x8x1xf32> to vector<2x8x32xf32>
    %88 = arith.subf %82, %87 : vector<2x8x32xf32>
    %89 = arith.mulf %88, %88 : vector<2x8x32xf32>
    %cst_29 = arith.constant dense<0.000000e+00> : vector<8xf32>
    %90 = vector.multi_reduction <add>, %89, %cst_29 [0, 2] : vector<2x8x32xf32> to vector<8xf32>
    %91 = vector.shape_cast %90 : vector<8xf32> to vector<1x8x1xf32>
    %cst_30 = arith.constant 6.400000e+01 : f32
    %92 = vector.broadcast %cst_30 : f32 to vector<1x8x1xf32>
    %93 = arith.divf %91, %92 : vector<1x8x1xf32>
    %cst_31 = arith.constant 9.99999974E-6 : f32
    %94 = vector.broadcast %cst_31 : f32 to vector<1x8x1xf32>
    %95 = arith.addf %93, %94 : vector<1x8x1xf32>
    %96 = math.rsqrt %95 : vector<1x8x1xf32>
    %97 = vector.broadcast %96 : vector<1x8x1xf32> to vector<2x8x32xf32>
    %98 = arith.mulf %88, %97 : vector<2x8x32xf32>
    %99 = vector.extract_strided_slice %8 {offsets = [0, 0, 0], sizes = [1, 8, 8], strides = [1, 1, 1]} : vector<2x8x8xf32> to vector<1x8x8xf32>
    %100 = vector.shape_cast %99 : vector<1x8x8xf32> to vector<8x8xf32>
    %101 = vector.extract_strided_slice %98 {offsets = [0, 0, 0], sizes = [1, 8, 32], strides = [1, 1, 1]} : vector<2x8x32xf32> to vector<1x8x32xf32>
    %102 = vector.shape_cast %101 : vector<1x8x32xf32> to vector<8x32xf32>
    %cst_32 = arith.constant dense<0.000000e+00> : vector<8x32xf32>
    %103 = tpu.matmul %100, %102, %cst_32 {dimension_numbers = #tpu.dot_dimension_numbers<[1], [0], [0], [1], [0, 0, 1, 1], [], []>} : vector<8x8xf32>, vector<8x32xf32>, vector<8x32xf32> -> vector<8x32xf32>
    %104 = vector.extract_strided_slice %8 {offsets = [1, 0, 0], sizes = [1, 8, 8], strides = [1, 1, 1]} : vector<2x8x8xf32> to vector<1x8x8xf32>
    %105 = vector.shape_cast %104 : vector<1x8x8xf32> to vector<8x8xf32>
    %106 = vector.extract_strided_slice %98 {offsets = [1, 0, 0], sizes = [1, 8, 32], strides = [1, 1, 1]} : vector<2x8x32xf32> to vector<1x8x32xf32>
    %107 = vector.shape_cast %106 : vector<1x8x32xf32> to vector<8x32xf32>
    %cst_33 = arith.constant dense<0.000000e+00> : vector<8x32xf32>
    %108 = tpu.matmul %105, %107, %cst_33 {dimension_numbers = #tpu.dot_dimension_numbers<[1], [0], [0], [1], [0, 0, 1, 1], [], []>} : vector<8x8xf32>, vector<8x32xf32>, vector<8x32xf32> -> vector<8x32xf32>
    %109 = tpu.concatenate %103, %108 in 0 : vector<8x32xf32>, vector<8x32xf32> -> vector<16x32xf32>
    %c0_34 = arith.constant 0 : index
    %c0_35 = arith.constant 0 : index
    %110 = vector.load %arg4[%c0_34, %c0_35] : memref<32x16xf32, #tpu.memory_space<vmem>>, vector<32x16xf32>
    %cst_36 = arith.constant dense<0.000000e+00> : vector<16x16xf32>
    %111 = tpu.matmul %109, %110, %cst_36 {dimension_numbers = #tpu.dot_dimension_numbers<[1], [0], [0], [1], [0, 0, 1, 1], [], []>} : vector<16x32xf32>, vector<32x16xf32>, vector<16x16xf32> -> vector<16x16xf32>
    %112 = vector.extract_strided_slice %9 {offsets = [2, 0], sizes = [1, 16], strides = [1, 1]} : vector<3x32xf32> to vector<1x16xf32>
    %113 = vector.broadcast %112 : vector<1x16xf32> to vector<16x16xf32>
    %114 = arith.addf %111, %113 : vector<16x16xf32>
    %115 = arith.mulf %114, %114 : vector<16x16xf32>
    %cst_37 = arith.constant dense<0.000000e+00> : vector<16xf32>
    %116 = vector.multi_reduction <add>, %115, %cst_37 [1] : vector<16x16xf32> to vector<16xf32>
    %117 = vector.shape_cast %116 : vector<16xf32> to vector<16x1xf32>
    %118 = math.sqrt %117 : vector<16x1xf32>
    %cst_38 = arith.constant 9.99999996E-13 : f32
    %119 = vector.broadcast %cst_38 : f32 to vector<16x1xf32>
    %120 = arith.maximumf %118, %119 : vector<16x1xf32>
    %121 = tpu.reciprocal %120 {approx = true} : vector<16x1xf32> -> vector<16x1xf32>
    %122 = vector.broadcast %121 : vector<16x1xf32> to vector<16x16xf32>
    %123 = arith.mulf %114, %122 : vector<16x16xf32>
    %124 = vector.shape_cast %123 : vector<16x16xf32> to vector<2x8x16xf32>
    %c0_39 = arith.constant 0 : index
    %c0_40 = arith.constant 0 : index
    %c0_41 = arith.constant 0 : index
    %125 = vector.load %arg6[%c0_39, %c0_40, %c0_41] : memref<2x8x16xf32, #tpu.memory_space<vmem>>, vector<2x8x16xf32>
    tpu.vector_store %arg6[%c0_39, %c0_40, %c0_41], %124 {strides = array<i32>} : memref<2x8x16xf32, #tpu.memory_space<vmem>>, vector<2x8x16xf32>,
    return
  }
}

</mosaic_0001>

<llo_original>
// kernel: att_decoder_forward.1
$region0: #{att_decoder_forward.1}
  #allocation0 [shape = 'u32[]', space=smem, size = 0x4, offset = 0x4, fixed_abs, tag = 'smem constant byte address 0x4 - core index']
  #allocation1 [shape = 'u32[144,128]{1,0:T(1,128)}', space=vmem, size = 0x12000, scoped, tag = 'internal scratch']
  %s0 = inlined_call_operand.vmem [shape: f32[2,8,8], index: 0, kind: input, shape index: {}]
  %s1 = inlined_call_operand.hbm [shape: f32[2,8,16], index: 1, kind: input, shape index: {}]
  %s2 = inlined_call_operand.hbm [shape: f32[16,32], index: 2, kind: input, shape index: {}]
  %s3 = inlined_call_operand.vmem [shape: f32[32,32], index: 3, kind: input, shape index: {}]
  %s4 = inlined_call_operand.vmem [shape: f32[32,16], index: 4, kind: input, shape index: {}]
  %s5 = inlined_call_operand.vmem [shape: f32[3,32], index: 5, kind: input, shape index: {}]
  %s6 = inlined_call_operand.hbm [shape: f32[2,8,16], index: 6, kind: output, shape index: {}]
  %s7 = sld [smem:[#allocation0]]
  $region42: #{att_decoder_forward.1} parent=0
    _
  %s9 = ssub.s32 1, %s7
  %s10 = scalar_select 0, %s9, %s7
  $region1: #{att_decoder_forward.1} parent=0
    #allocation2 [shape = 'u8[8192]{0}', space=vmem, size = 0x2000, scoped, tag = 'input window, operand 1, single buffered']
    #allocation3 [shape = 's32[1]{0}', space=sflag, size = 0x4, scoped, tag = 'scoped memory for att_decoder_forward.1']
    #allocation4 [shape = 's32[1]{0}', space=sflag, size = 0x4, scoped, tag = 'scoped memory for att_decoder_forward.1']
    #allocation5 [shape = 'u8[8192]{0}', space=vmem, size = 0x2000, scoped, tag = 'input window, operand 2, single buffered']
    #allocation6 [shape = 's32[1]{0}', space=sflag, size = 0x4, scoped, tag = 'scoped memory for att_decoder_forward.1']
    #allocation7 [shape = 'u8[8192]{0}', space=vmem, size = 0x2000, scoped, tag = 'output window, operand 0, single buffered']
    %11 = vsyncpa [#allocation3], 0
    %12 = vsyncpa [#allocation6], 0
    %13 = vsyncpa [#allocation4], 0
    // Predicated region
    $region2: #{att_decoder_forward.1} parent=1 // pred_check
      _
    $region3: #{att_decoder_forward.1} parent=1 // pred_check_branch
      %15 = sbr.rel (0) target = $region5
    $region4: #{att_decoder_forward.1} parent=1 // pred_region
      _
    $region5: #{att_decoder_forward.1} parent=1 // pred_fallthru
      _
    // Predicated region
    $region6: #{att_decoder_forward.1} parent=1 // pred_check
      _
    $region7: #{att_decoder_forward.1} parent=1 // pred_check_branch
      %17 = sbr.rel (0) target = $region9
    $region8: #{att_decoder_forward.1} parent=1 // pred_region
      %s19 = ssub.s32 256, 256
      %20 = vsyncadd [#allocation3], %s19
      %s21 = sshll.u32 [#allocation2], 4
      %s22 = int_to_ptr.vmem [resolvable:$true] %s21
      %27 = dma.hbm_to_vmem [thread:$0]  %s1, 256, %s22, [#allocation3], 128, 128, 8
    $region9: #{att_decoder_forward.1} parent=1 // pred_fallthru
      _
    // Predicated region
    $region10: #{att_decoder_forward.1} parent=1 // pred_check
      _
    $region11: #{att_decoder_forward.1} parent=1 // pred_check_branch
      %29 = sbr.rel (0) target = $region13
    $region12: #{att_decoder_forward.1} parent=1 // pred_region
      %s31 = ssub.s32 256, 256
      %32 = vsyncadd [#allocation6], %s31
      %s33 = sshll.u32 [#allocation5], 4
      %s34 = int_to_ptr.vmem [resolvable:$true] %s33
      %39 = dma.hbm_to_vmem [thread:$0]  %s2, 256, %s34, [#allocation6], 128, 128, 8
    $region13: #{att_decoder_forward.1} parent=1 // pred_fallthru
      _
    // Predicated region
    $region14: #{att_decoder_forward.1} parent=1 // pred_check
      _
    $region15: #{att_decoder_forward.1} parent=1 // pred_check_branch
      %41 = sbr.rel (0) target = $region17
    $region16: #{att_decoder_forward.1} parent=1 // pred_region
      _
    $region17: #{att_decoder_forward.1} parent=1 // pred_fallthru
      _
    // Predicated region
    $region18: #{att_decoder_forward.1} parent=1 // pred_check
      _
    $region19: #{att_decoder_forward.1} parent=1 // pred_check_branch
      %43 = sbr.rel (0) target = $region21
    $region20: #{att_decoder_forward.1} parent=1 // pred_region
      _
    $region21: #{att_decoder_forward.1} parent=1 // pred_fallthru
      _
    // Predicated region
    $region22: #{att_decoder_forward.1} parent=1 // pred_check
      _
    $region23: #{att_decoder_forward.1} parent=1 // pred_check_branch
      %45 = sbr.rel (0) target = $region25
    $region24: #{att_decoder_forward.1} parent=1 // pred_region
      _
    $region25: #{att_decoder_forward.1} parent=1 // pred_fallthru
      _
    // Predicated region
    $region26: #{att_decoder_forward.1} parent=1 // pred_check
      _
    $region27: #{att_decoder_forward.1} parent=1 // pred_check_branch
      %47 = sbr.rel (0) target = $region29
    $region28: #{att_decoder_forward.1} parent=1 // pred_region
      %48 = dma.done [#allocation3], 256
    $region29: #{att_decoder_forward.1} parent=1 // pred_fallthru
      _
    // Predicated region
    $region30: #{att_decoder_forward.1} parent=1 // pred_check
      _
    $region31: #{att_decoder_forward.1} parent=1 // pred_check_branch
      %50 = sbr.rel (0) target = $region33
    $region32: #{att_decoder_forward.1} parent=1 // pred_region
      %51 = dma.done [#allocation6], 256
    $region33: #{att_decoder_forward.1} parent=1 // pred_fallthru
      _
    %v52 = vlaneseq
    %v53 = vshrl.u32 %v52, 7
    %v54 = vlaneseq
    %v55 = vand.u32 %v54, 127
    %vm56 = vcmp.eq.s32.totalorder %v53, %v55
    %v57 = vsel %vm56, 1, 0
    %v58 = vcvt.s32.f32 %v57
    %v59 = vld [vmem:[%s0] sm:$0xff]
    %v60 = vld [vmem:[%s0 + $0x8] sm:$0xff]
    %v61 = vadd.f32 %v59, %v58
    %v62 = vadd.f32 %v60, %v58
    %v63 = vld [vmem:[%s5] sm:$0x7]
    %v64 = vld [vmem:[#allocation2] sm:$0xff]
    %v65 = vld [vmem:[#allocation2 + $0x8] sm:$0xff]
    %vm66 = vcmask 64512
    %v68 = vsel %vm66, %v61, 0
    %70 = vmatprep.subr.mxu0 0.0
    %71 = vmatpush1.msra.mxu0 0.0
    %72 = vmatprep.subr.mxu0 0.0
    %73 = vmatpush1.msra.mxu0 0.0
    %74 = vmatprep.subr.mxu0 0.0
    %75 = vmatpush1.msra.mxu0 0.0
    %76 = vmatprep.subr.mxu0 0.0
    %77 = vmatpush1.msra.mxu0 0.0
    %78 = vmatprep.subr.mxu0 0.0
    %79 = vmatpush1.msra.mxu0 0.0
    %80 = vmatprep.subr.mxu0 0.0
    %81 = vmatpush1.msra.mxu0 0.0
    %82 = vmatprep.subr.mxu0 0.0
    %83 = vmatpush1.msra.mxu0 0.0
    %84 = vmatprep.subr.mxu0 0.0
    %85 = vmatpush1.msra.mxu0 0.0
    %86 = vmatprep.subr.mxu0 0.0
    %87 = vmatpush1.msra.mxu0 0.0
    %88 = vmatprep.subr.mxu0 0.0
    %89 = vmatpush1.msra.mxu0 0.0
    %90 = vmatprep.subr.mxu0 0.0
    %91 = vmatpush1.msra.mxu0 0.0
    %92 = vmatprep.subr.mxu0 0.0
    %93 = vmatpush1.msra.mxu0 0.0
    %94 = vmatprep.subr.mxu0 0.0
    %95 = vmatpush1.msra.mxu0 0.0
    %96 = vmatprep.subr.mxu0 0.0
    %97 = vmatpush1.msra.mxu0 0.0
    %98 = vmatprep.subr.mxu0 0.0
    %99 = vmatpush1.msra.mxu0 0.0
    %100 = vmatprep.subr.mxu0 0.0
    %101 = vmatpush1.msra.mxu0 %v64
    %102 = vmatprep.subr.mxu0 0.0
    %103 = vmatpush2.msra.mxu0 0.0
    %104 = vmatprep.subr.mxu0 0.0
    %105 = vmatpush2.msra.mxu0 0.0
    %106 = vmatprep.subr.mxu0 0.0
    %107 = vmatpush2.msra.mxu0 0.0
    %108 = vmatprep.subr.mxu0 0.0
    %109 = vmatpush2.msra.mxu0 0.0
    %110 = vmatprep.subr.mxu0 0.0
    %111 = vmatpush2.msra.mxu0 0.0
    %112 = vmatprep.subr.mxu0 0.0
    %113 = vmatpush2.msra.mxu0 0.0
    %114 = vmatprep.subr.mxu0 0.0
    %115 = vmatpush2.msra.mxu0 0.0
    %116 = vmatprep.subr.mxu0 0.0
    %117 = vmatpush2.msra.mxu0 0.0
    %118 = vmatprep.subr.mxu0 0.0
    %119 = vmatpush2.msra.mxu0 0.0
    %120 = vmatprep.subr.mxu0 0.0
    %121 = vmatpush2.msra.mxu0 0.0
    %122 = vmatprep.subr.mxu0 0.0
    %123 = vmatpush2.msra.mxu0 0.0
    %124 = vmatprep.subr.mxu0 0.0
    %125 = vmatpush2.msra.mxu0 0.0
    %126 = vmatprep.subr.mxu0 0.0
    %127 = vmatpush2.msra.mxu0 0.0
    %128 = vmatprep.subr.mxu0 0.0
    %129 = vmatpush2.msra.mxu0 0.0
    %130 = vmatprep.subr.mxu0 0.0
    %131 = vmatpush2.msra.mxu0 0.0
    %132 = vmatprep.subr.mxu0 0.0
    %133 = vmatpush2.msra.mxu0 0.0
    %134 = vmatprep.mubr.f32.mxu0 0.0
    %135 = vmatmul.mubr.f32.gmra.mxu0 %v68
    %v136 = vpop.f32.mrf.mxu0
    %v137 = vadd.f32 0.0, %v136
    %v138 = vpop.f32.mrf.mxu0
    %139 = vdwg.mxu0
    %v141 = vsel %vm66, %v62, 0
    %143 = vmatprep.subr.mxu0 0.0
    %144 = vmatpush1.msra.mxu0 0.0
    %145 = vmatprep.subr.mxu0 0.0
    %146 = vmatpush1.msra.mxu0 0.0
    %147 = vmatprep.subr.mxu0 0.0
    %148 = vmatpush1.msra.mxu0 0.0
    %149 = vmatprep.subr.mxu0 0.0
    %150 = vmatpush1.msra.mxu0 0.0
    %151 = vmatprep.subr.mxu0 0.0
    %152 = vmatpush1.msra.mxu0 0.0
    %153 = vmatprep.subr.mxu0 0.0
    %154 = vmatpush1.msra.mxu0 0.0
    %155 = vmatprep.subr.mxu0 0.0
    %156 = vmatpush1.msra.mxu0 0.0
    %157 = vmatprep.subr.mxu0 0.0
    %158 = vmatpush1.msra.mxu0 0.0
    %159 = vmatprep.subr.mxu0 0.0
    %160 = vmatpush1.msra.mxu0 0.0
    %161 = vmatprep.subr.mxu0 0.0
    %162 = vmatpush1.msra.mxu0 0.0
    %163 = vmatprep.subr.mxu0 0.0
    %164 = vmatpush1.msra.mxu0 0.0
    %165 = vmatprep.subr.mxu0 0.0
    %166 = vmatpush1.msra.mxu0 0.0
    %167 = vmatprep.subr.mxu0 0.0
    %168 = vmatpush1.msra.mxu0 0.0
    %169 = vmatprep.subr.mxu0 0.0
    %170 = vmatpush1.msra.mxu0 0.0
    %171 = vmatprep.subr.mxu0 0.0
    %172 = vmatpush1.msra.mxu0 0.0
    %173 = vmatprep.subr.mxu0 0.0
    %174 = vmatpush1.msra.mxu0 %v65
    %175 = vmatprep.subr.mxu0 0.0
    %176 = vmatpush2.msra.mxu0 0.0
    %177 = vmatprep.subr.mxu0 0.0
    %178 = vmatpush2.msra.mxu0 0.0
    %179 = vmatprep.subr.mxu0 0.0
    %180 = vmatpush2.msra.mxu0 0.0
    %181 = vmatprep.subr.mxu0 0.0
    %182 = vmatpush2.msra.mxu0 0.0
    %183 = vmatprep.subr.mxu0 0.0
    %184 = vmatpush2.msra.mxu0 0.0
    %185 = vmatprep.subr.mxu0 0.0
    %186 = vmatpush2.msra.mxu0 0.0
    %187 = vmatprep.subr.mxu0 0.0
    %188 = vmatpush2.msra.mxu0 0.0
    %189 = vmatprep.subr.mxu0 0.0
    %190 = vmatpush2.msra.mxu0 0.0
    %191 = vmatprep.subr.mxu0 0.0
    %192 = vmatpush2.msra.mxu0 0.0
    %193 = vmatprep.subr.mxu0 0.0
    %194 = vmatpush2.msra.mxu0 0.0
    %195 = vmatprep.subr.mxu0 0.0
    %196 = vmatpush2.msra.mxu0 0.0
    %197 = vmatprep.subr.mxu0 0.0
    %198 = vmatpush2.msra.mxu0 0.0
    %199 = vmatprep.subr.mxu0 0.0
    %200 = vmatpush2.msra.mxu0 0.0
    %201 = vmatprep.subr.mxu0 0.0
    %202 = vmatpush2.msra.mxu0 0.0
    %203 = vmatprep.subr.mxu0 0.0
    %204 = vmatpush2.msra.mxu0 0.0
    %205 = vmatprep.subr.mxu0 0.0
    %206 = vmatpush2.msra.mxu0 0.0
    %207 = vmatprep.mubr.f32.mxu0 0.0
    %208 = vmatmul.mubr.f32.gmra.mxu0 %v141
    %v209 = vpop.f32.mrf.mxu0
    %v210 = vadd.f32 0.0, %v209
    %v211 = vpop.f32.mrf.mxu0
    %212 = vdwg.mxu0
    %v213 = vld [vmem:[#allocation5] sm:$0xff]
    %v214 = vld [vmem:[#allocation5 + $0x8] sm:$0xff]
    %v215 = vlaneseq
    %v216 = vshrl.u32 %v215, 7
    %v217 = vsub.s32 0, %v216
    %v218 = vrot.slane %v63, %v217
    %vm219 = vcmask 130048
    %v221 = vsel %vm219, %v137, 0
    %v224 = vsel %vm219, %v210, 0
    %226 = vmatprep.subr.mxu0 0.0
    %227 = vmatpush1.msra.mxu0 0.0
    %228 = vmatprep.subr.mxu0 0.0
    %229 = vmatpush1.msra.mxu0 0.0
    %230 = vmatprep.subr.mxu0 0.0
    %231 = vmatpush1.msra.mxu0 0.0
    %232 = vmatprep.subr.mxu0 0.0
    %233 = vmatpush1.msra.mxu0 0.0
    %234 = vmatprep.subr.mxu0 0.0
    %235 = vmatpush1.msra.mxu0 0.0
    %236 = vmatprep.subr.mxu0 0.0
    %237 = vmatpush1.msra.mxu0 0.0
    %238 = vmatprep.subr.mxu0 0.0
    %239 = vmatpush1.msra.mxu0 0.0
    %240 = vmatprep.subr.mxu0 0.0
    %241 = vmatpush1.msra.mxu0 0.0
    %242 = vmatprep.subr.mxu0 0.0
    %243 = vmatpush1.msra.mxu0 0.0
    %244 = vmatprep.subr.mxu0 0.0
    %245 = vmatpush1.msra.mxu0 0.0
    %246 = vmatprep.subr.mxu0 0.0
    %247 = vmatpush1.msra.mxu0 0.0
    %248 = vmatprep.subr.mxu0 0.0
    %249 = vmatpush1.msra.mxu0 0.0
    %250 = vmatprep.subr.mxu0 0.0
    %251 = vmatpush1.msra.mxu0 0.0
    %252 = vmatprep.subr.mxu0 0.0
    %253 = vmatpush1.msra.mxu0 0.0
    %254 = vmatprep.subr.mxu0 0.0
    %255 = vmatpush1.msra.mxu0 %v214
    %256 = vmatprep.subr.mxu0 0.0
    %257 = vmatpush1.msra.mxu0 %v213
    %258 = vmatprep.subr.mxu0 0.0
    %259 = vmatpush2.msra.mxu0 0.0
    %260 = vmatprep.subr.mxu0 0.0
    %261 = vmatpush2.msra.mxu0 0.0
    %262 = vmatprep.subr.mxu0 0.0
    %263 = vmatpush2.msra.mxu0 0.0
    %264 = vmatprep.subr.mxu0 0.0
    %265 = vmatpush2.msra.mxu0 0.0
    %266 = vmatprep.subr.mxu0 0.0
    %267 = vmatpush2.msra.mxu0 0.0
    %268 = vmatprep.subr.mxu0 0.0
    %269 = vmatpush2.msra.mxu0 0.0
    %270 = vmatprep.subr.mxu0 0.0
    %271 = vmatpush2.msra.mxu0 0.0
    %272 = vmatprep.subr.mxu0 0.0
    %273 = vmatpush2.msra.mxu0 0.0
    %274 = vmatprep.subr.mxu0 0.0
    %275 = vmatpush2.msra.mxu0 0.0
    %276 = vmatprep.subr.mxu0 0.0
    %277 = vmatpush2.msra.mxu0 0.0
    %278 = vmatprep.subr.mxu0 0.0
    %279 = vmatpush2.msra.mxu0 0.0
    %280 = vmatprep.subr.mxu0 0.0
    %281 = vmatpush2.msra.mxu0 0.0
    %282 = vmatprep.subr.mxu0 0.0
    %283 = vmatpush2.msra.mxu0 0.0
    %284 = vmatprep.subr.mxu0 0.0
    %285 = vmatpush2.msra.mxu0 0.0
    %286 = vmatprep.subr.mxu0 0.0
    %287 = vmatpush2.msra.mxu0 0.0
    %288 = vmatprep.subr.mxu0 0.0
    %289 = vmatpush2.msra.mxu0 0.0
    %290 = vmatprep.mubr.f32.mxu0 0.0
    %291 = vmatmul.mubr.f32.gmra.mxu0 %v221
    %v292 = vpop.f32.mrf.mxu0
    %v293 = vadd.f32 %v218, %v292
    %v294 = vpop.f32.mrf.mxu0
    %295 = vmatprep.mubr.f32.mxu0 0.0
    %296 = vmatmul.mubr.f32.gmra.mxu0 %v224
    %v297 = vpop.f32.mrf.mxu0
    %v298 = vadd.f32 %v218, %v297
    %v299 = vpop.f32.mrf.mxu0
    %300 = vdwg.mxu0
    %v301 = vmul.f32 %v293, %v293
    %v302 = vmul.f32 %v298, %v298
    %vm303 = vcmask 261120
    %v304 = vsel %vm303, %v301, 0.0
    %305 = vadd.xlane.f32.xlu0 %v304
    %v306 = vpop.xlane.xlu0 %305
    %v307 = vsel %vm303, %v302, 0.0
    %308 = vadd.xlane.f32.xlu0 %v307
    %v309 = vpop.xlane.xlu0 %308
    %v310 = vrsqrt.pop %v306
    %v311 = vmul.f32 %v306, %v310
    %vm312 = vcmp.eq.f32.partialorder %v306, inf
    %v313 = vsel %vm312, %v306, %v311
    %vm314 = vcmp.eq.f32.partialorder %v306, 0.0
    %v315 = vand.u32 %v306, 2147483648
    %v316 = vsel %vm314, %v315, %v313
    %v317 = vrsqrt.pop %v309
    %v318 = vmul.f32 %v309, %v317
    %vm319 = vcmp.eq.f32.partialorder %v309, inf
    %v320 = vsel %vm319, %v309, %v318
    %vm321 = vcmp.eq.f32.partialorder %v309, 0.0
    %v322 = vand.u32 %v309, 2147483648
    %v323 = vsel %vm321, %v322, %v320
    %v324 = vmax.f32 %v316, 1e-12
    %v325 = vmax.f32 %v323, 1e-12
    %v326 = vrcp.pop %v324
    %v327 = vrcp.pop %v325
    %v328 = vmul.f32 %v293, %v326
    %v329 = vmul.f32 %v298, %v327
    %v330 = vmax.f32 %v328, 0.0
    %v331 = vmax.f32 %v329, 0.0
    %v332 = vsel %vm303, %v330, 0.0
    %v333 = vsel %vm303, %v331, 0.0
    %v334 = vadd.f32 %v332, %v333
    %335 = vadd.xlane.f32.xlu0 %v334
    %v336 = vpop.xlane.xlu0 %335
    %v337 = vrcp.pop 64.0
    %v338 = vmul.f32 %v336, %v337
    %v339 = vsub.f32 %v330, %v338
    %v340 = vsub.f32 %v331, %v338
    %v341 = vmul.f32 %v339, %v339
    %v342 = vmul.f32 %v340, %v340
    %v343 = vsel %vm303, %v341, 0.0
    %v344 = vsel %vm303, %v342, 0.0
    %v345 = vadd.f32 %v343, %v344
    %346 = vadd.xlane.f32.xlu0 %v345
    %v347 = vpop.xlane.xlu0 %346
    %v348 = vmul.f32 %v347, %v337
    %v349 = vadd.f32 %v348, 1e-05
    %v350 = vrsqrt.pop %v349
    %v351 = vmul.f32 %v339, %v350
    %v352 = vmul.f32 %v340, %v350
    %353 = vmatprep.subr.mxu0 0.0
    %354 = vmatpush1.msra.mxu0 0.0
    %355 = vmatprep.subr.mxu0 0.0
    %356 = vmatpush1.msra.mxu0 0.0
    %357 = vmatprep.subr.mxu0 0.0
    %358 = vmatpush1.msra.mxu0 0.0
    %359 = vmatprep.subr.mxu0 0.0
    %360 = vmatpush1.msra.mxu0 0.0
    %361 = vmatprep.subr.mxu0 0.0
    %362 = vmatpush1.msra.mxu0 0.0
    %363 = vmatprep.subr.mxu0 0.0
    %364 = vmatpush1.msra.mxu0 0.0
    %365 = vmatprep.subr.mxu0 0.0
    %366 = vmatpush1.msra.mxu0 0.0
    %367 = vmatprep.subr.mxu0 0.0
    %368 = vmatpush1.msra.mxu0 0.0
    %369 = vmatprep.subr.mxu0 0.0
    %370 = vmatpush1.msra.mxu0 0.0
    %371 = vmatprep.subr.mxu0 0.0
    %372 = vmatpush1.msra.mxu0 0.0
    %373 = vmatprep.subr.mxu0 0.0
    %374 = vmatpush1.msra.mxu0 0.0
    %375 = vmatprep.subr.mxu0 0.0
    %376 = vmatpush1.msra.mxu0 0.0
    %377 = vmatprep.subr.mxu0 0.0
    %378 = vmatpush1.msra.mxu0 0.0
    %379 = vmatprep.subr.mxu0 0.0
    %380 = vmatpush1.msra.mxu0 0.0
    %381 = vmatprep.subr.mxu0 0.0
    %382 = vmatpush1.msra.mxu0 0.0
    %383 = vmatprep.subr.mxu0 0.0
    %384 = vmatpush1.msra.mxu0 %v351
    %385 = vmatprep.subr.mxu0 0.0
    %386 = vmatpush2.msra.mxu0 0.0
    %387 = vmatprep.subr.mxu0 0.0
    %388 = vmatpush2.msra.mxu0 0.0
    %389 = vmatprep.subr.mxu0 0.0
    %390 = vmatpush2.msra.mxu0 0.0
    %391 = vmatprep.subr.mxu0 0.0
    %392 = vmatpush2.msra.mxu0 0.0
    %393 = vmatprep.subr.mxu0 0.0
    %394 = vmatpush2.msra.mxu0 0.0
    %395 = vmatprep.subr.mxu0 0.0
    %396 = vmatpush2.msra.mxu0 0.0
    %397 = vmatprep.subr.mxu0 0.0
    %398 = vmatpush2.msra.mxu0 0.0
    %399 = vmatprep.subr.mxu0 0.0
    %400 = vmatpush2.msra.mxu0 0.0
    %401 = vmatprep.subr.mxu0 0.0
    %402 = vmatpush2.msra.mxu0 0.0
    %403 = vmatprep.subr.mxu0 0.0
    %404 = vmatpush2.msra.mxu0 0.0
    %405 = vmatprep.subr.mxu0 0.0
    %406 = vmatpush2.msra.mxu0 0.0
    %407 = vmatprep.subr.mxu0 0.0
    %408 = vmatpush2.msra.mxu0 0.0
    %409 = vmatprep.subr.mxu0 0.0
    %410 = vmatpush2.msra.mxu0 0.0
    %411 = vmatprep.subr.mxu0 0.0
    %412 = vmatpush2.msra.mxu0 0.0
    %413 = vmatprep.subr.mxu0 0.0
    %414 = vmatpush2.msra.mxu0 0.0
    %415 = vmatprep.subr.mxu0 0.0
    %416 = vmatpush2.msra.mxu0 0.0
    %417 = vmatprep.mubr.f32.mxu0 0.0
    %418 = vmatmul.mubr.f32.gmra.mxu0 %v68
    %v419 = vpop.f32.mrf.mxu0
    %v420 = vadd.f32 0.0, %v419
    %v421 = vpop.f32.mrf.mxu0
    %422 = vdwg.mxu0
    %423 = vmatprep.subr.mxu0 0.0
    %424 = vmatpush1.msra.mxu0 0.0
    %425 = vmatprep.subr.mxu0 0.0
    %426 = vmatpush1.msra.mxu0 0.0
    %427 = vmatprep.subr.mxu0 0.0
    %428 = vmatpush1.msra.mxu0 0.0
    %429 = vmatprep.subr.mxu0 0.0
    %430 = vmatpush1.msra.mxu0 0.0
    %431 = vmatprep.subr.mxu0 0.0
    %432 = vmatpush1.msra.mxu0 0.0
    %433 = vmatprep.subr.mxu0 0.0
    %434 = vmatpush1.msra.mxu0 0.0
    %435 = vmatprep.subr.mxu0 0.0
    %436 = vmatpush1.msra.mxu0 0.0
    %437 = vmatprep.subr.mxu0 0.0
    %438 = vmatpush1.msra.mxu0 0.0
    %439 = vmatprep.subr.mxu0 0.0
    %440 = vmatpush1.msra.mxu0 0.0
    %441 = vmatprep.subr.mxu0 0.0
    %442 = vmatpush1.msra.mxu0 0.0
    %443 = vmatprep.subr.mxu0 0.0
    %444 = vmatpush1.msra.mxu0 0.0
    %445 = vmatprep.subr.mxu0 0.0
    %446 = vmatpush1.msra.mxu0 0.0
    %447 = vmatprep.subr.mxu0 0.0
    %448 = vmatpush1.msra.mxu0 0.0
    %449 = vmatprep.subr.mxu0 0.0
    %450 = vmatpush1.msra.mxu0 0.0
    %451 = vmatprep.subr.mxu0 0.0
    %452 = vmatpush1.msra.mxu0 0.0
    %453 = vmatprep.subr.mxu0 0.0
    %454 = vmatpush1.msra.mxu0 %v352
    %455 = vmatprep.subr.mxu0 0.0
    %456 = vmatpush2.msra.mxu0 0.0
    %457 = vmatprep.subr.mxu0 0.0
    %458 = vmatpush2.msra.mxu0 0.0
    %459 = vmatprep.subr.mxu0 0.0
    %460 = vmatpush2.msra.mxu0 0.0
    %461 = vmatprep.subr.mxu0 0.0
    %462 = vmatpush2.msra.mxu0 0.0
    %463 = vmatprep.subr.mxu0 0.0
    %464 = vmatpush2.msra.mxu0 0.0
    %465 = vmatprep.subr.mxu0 0.0
    %466 = vmatpush2.msra.mxu0 0.0
    %467 = vmatprep.subr.mxu0 0.0
    %468 = vmatpush2.msra.mxu0 0.0
    %469 = vmatprep.subr.mxu0 0.0
    %470 = vmatpush2.msra.mxu0 0.0
    %471 = vmatprep.subr.mxu0 0.0
    %472 = vmatpush2.msra.mxu0 0.0
    %473 = vmatprep.subr.mxu0 0.0
    %474 = vmatpush2.msra.mxu0 0.0
    %475 = vmatprep.subr.mxu0 0.0
    %476 = vmatpush2.msra.mxu0 0.0
    %477 = vmatprep.subr.mxu0 0.0
    %478 = vmatpush2.msra.mxu0 0.0
    %479 = vmatprep.subr.mxu0 0.0
    %480 = vmatpush2.msra.mxu0 0.0
    %481 = vmatprep.subr.mxu0 0.0
    %482 = vmatpush2.msra.mxu0 0.0
    %483 = vmatprep.subr.mxu0 0.0
    %484 = vmatpush2.msra.mxu0 0.0
    %485 = vmatprep.subr.mxu0 0.0
    %486 = vmatpush2.msra.mxu0 0.0
    %487 = vmatprep.mubr.f32.mxu0 0.0
    %488 = vmatmul.mubr.f32.gmra.mxu0 %v141
    %v489 = vpop.f32.mrf.mxu0
    %v490 = vadd.f32 0.0, %v489
    %v491 = vpop.f32.mrf.mxu0
    %492 = vdwg.mxu0
    %v493 = vld [vmem:[%s3] sm:$0xff]
    %v494 = vld [vmem:[%s3 + $0x8] sm:$0xff]
    %v495 = vld [vmem:[%s3 + $0x10] sm:$0xff]
    %v496 = vld [vmem:[%s3 + $0x18] sm:$0xff]
    %v497 = vlaneseq
    %v498 = vshrl.u32 %v497, 7
    %v499 = vsub.s32 1, %v498
    %v500 = vrot.slane %v63, %v499
    %v502 = vsel %vm303, %v420, 0
    %v505 = vsel %vm303, %v490, 0
    %507 = vmatprep.subr.mxu0 0.0
    %508 = vmatpush1.msra.mxu0 0.0
    %509 = vmatprep.subr.mxu0 0.0
    %510 = vmatpush1.msra.mxu0 0.0
    %511 = vmatprep.subr.mxu0 0.0
    %512 = vmatpush1.msra.mxu0 0.0
    %513 = vmatprep.subr.mxu0 0.0
    %514 = vmatpush1.msra.mxu0 0.0
    %515 = vmatprep.subr.mxu0 0.0
    %516 = vmatpush1.msra.mxu0 0.0
    %517 = vmatprep.subr.mxu0 0.0
    %518 = vmatpush1.msra.mxu0 0.0
    %519 = vmatprep.subr.mxu0 0.0
    %520 = vmatpush1.msra.mxu0 0.0
    %521 = vmatprep.subr.mxu0 0.0
    %522 = vmatpush1.msra.mxu0 0.0
    %523 = vmatprep.subr.mxu0 0.0
    %524 = vmatpush1.msra.mxu0 0.0
    %525 = vmatprep.subr.mxu0 0.0
    %526 = vmatpush1.msra.mxu0 0.0
    %527 = vmatprep.subr.mxu0 0.0
    %528 = vmatpush1.msra.mxu0 0.0
    %529 = vmatprep.subr.mxu0 0.0
    %530 = vmatpush1.msra.mxu0 0.0
    %531 = vmatprep.subr.mxu0 0.0
    %532 = vmatpush1.msra.mxu0 %v496
    %533 = vmatprep.subr.mxu0 0.0
    %534 = vmatpush1.msra.mxu0 %v495
    %535 = vmatprep.subr.mxu0 0.0
    %536 = vmatpush1.msra.mxu0 %v494
    %537 = vmatprep.subr.mxu0 0.0
    %538 = vmatpush1.msra.mxu0 %v493
    %539 = vmatprep.subr.mxu0 0.0
    %540 = vmatpush2.msra.mxu0 0.0
    %541 = vmatprep.subr.mxu0 0.0
    %542 = vmatpush2.msra.mxu0 0.0
    %543 = vmatprep.subr.mxu0 0.0
    %544 = vmatpush2.msra.mxu0 0.0
    %545 = vmatprep.subr.mxu0 0.0
    %546 = vmatpush2.msra.mxu0 0.0
    %547 = vmatprep.subr.mxu0 0.0
    %548 = vmatpush2.msra.mxu0 0.0
    %549 = vmatprep.subr.mxu0 0.0
    %550 = vmatpush2.msra.mxu0 0.0
    %551 = vmatprep.subr.mxu0 0.0
    %552 = vmatpush2.msra.mxu0 0.0
    %553 = vmatprep.subr.mxu0 0.0
    %554 = vmatpush2.msra.mxu0 0.0
    %555 = vmatprep.subr.mxu0 0.0
    %556 = vmatpush2.msra.mxu0 0.0
    %557 = vmatprep.subr.mxu0 0.0
    %558 = vmatpush2.msra.mxu0 0.0
    %559 = vmatprep.subr.mxu0 0.0
    %560 = vmatpush2.msra.mxu0 0.0
    %561 = vmatprep.subr.mxu0 0.0
    %562 = vmatpush2.msra.mxu0 0.0
    %563 = vmatprep.subr.mxu0 0.0
    %564 = vmatpush2.msra.mxu0 0.0
    %565 = vmatprep.subr.mxu0 0.0
    %566 = vmatpush2.msra.mxu0 0.0
    %567 = vmatprep.subr.mxu0 0.0
    %568 = vmatpush2.msra.mxu0 0.0
    %569 = vmatprep.subr.mxu0 0.0
    %570 = vmatpush2.msra.mxu0 0.0
    %571 = vmatprep.mubr.f32.mxu0 0.0
    %572 = vmatmul.mubr.f32.gmra.mxu0 %v502
    %v573 = vpop.f32.mrf.mxu0
    %v574 = vadd.f32 %v500, %v573
    %v575 = vpop.f32.mrf.mxu0
    %576 = vmatprep.mubr.f32.mxu0 0.0
    %577 = vmatmul.mubr.f32.gmra.mxu0 %v505
    %v578 = vpop.f32.mrf.mxu0
    %v579 = vadd.f32 %v500, %v578
    %v580 = vpop.f32.mrf.mxu0
    %581 = vdwg.mxu0
    %v582 = vmul.f32 %v574, %v574
    %v583 = vmul.f32 %v579, %v579
    %v584 = vsel %vm303, %v582, 0.0
    %585 = vadd.xlane.f32.xlu0 %v584
    %v586 = vpop.xlane.xlu0 %585
    %v587 = vsel %vm303, %v583, 0.0
    %588 = vadd.xlane.f32.xlu0 %v587
    %v589 = vpop.xlane.xlu0 %588
    %v590 = vrsqrt.pop %v586
    %v591 = vmul.f32 %v586, %v590
    %vm592 = vcmp.eq.f32.partialorder %v586, inf
    %v593 = vsel %vm592, %v586, %v591
    %vm594 = vcmp.eq.f32.partialorder %v586, 0.0
    %v595 = vand.u32 %v586, 2147483648
    %v596 = vsel %vm594, %v595, %v593
    %v597 = vrsqrt.pop %v589
    %v598 = vmul.f32 %v589, %v597
    %vm599 = vcmp.eq.f32.partialorder %v589, inf
    %v600 = vsel %vm599, %v589, %v598
    %vm601 = vcmp.eq.f32.partialorder %v589, 0.0
    %v602 = vand.u32 %v589, 2147483648
    %v603 = vsel %vm601, %v602, %v600
    %v604 = vmax.f32 %v596, 1e-12
    %v605 = vmax.f32 %v603, 1e-12
    %v606 = vrcp.pop %v604
    %v607 = vrcp.pop %v605
    %v608 = vmul.f32 %v574, %v606
    %v609 = vmul.f32 %v579, %v607
    %v610 = vmax.f32 %v608, 0.0
    %v611 = vmax.f32 %v609, 0.0
    %v612 = vsel %vm303, %v610, 0.0
    %v613 = vsel %vm303, %v611, 0.0
    %v614 = vadd.f32 %v612, %v613
    %615 = vadd.xlane.f32.xlu0 %v614
    %v616 = vpop.xlane.xlu0 %615
    %v617 = vmul.f32 %v616, %v337
    %v618 = vsub.f32 %v610, %v617
    %v619 = vsub.f32 %v611, %v617
    %v620 = vmul.f32 %v618, %v618
    %v621 = vmul.f32 %v619, %v619
    %v622 = vsel %vm303, %v620, 0.0
    %v623 = vsel %vm303, %v621, 0.0
    %v624 = vadd.f32 %v622, %v623
    %625 = vadd.xlane.f32.xlu0 %v624
    %v626 = vpop.xlane.xlu0 %625
    %v627 = vmul.f32 %v626, %v337
    %v628 = vadd.f32 %v627, 1e-05
    %v629 = vrsqrt.pop %v628
    %v630 = vmul.f32 %v618, %v629
    %v631 = vmul.f32 %v619, %v629
    %632 = vmatprep.subr.mxu0 0.0
    %633 = vmatpush1.msra.mxu0 0.0
    %634 = vmatprep.subr.mxu0 0.0
    %635 = vmatpush1.msra.mxu0 0.0
    %636 = vmatprep.subr.mxu0 0.0
    %637 = vmatpush1.msra.mxu0 0.0
    %638 = vmatprep.subr.mxu0 0.0
    %639 = vmatpush1.msra.mxu0 0.0
    %640 = vmatprep.subr.mxu0 0.0
    %641 = vmatpush1.msra.mxu0 0.0
    %642 = vmatprep.subr.mxu0 0.0
    %643 = vmatpush1.msra.mxu0 0.0
    %644 = vmatprep.subr.mxu0 0.0
    %645 = vmatpush1.msra.mxu0 0.0
    %646 = vmatprep.subr.mxu0 0.0
    %647 = vmatpush1.msra.mxu0 0.0
    %648 = vmatprep.subr.mxu0 0.0
    %649 = vmatpush1.msra.mxu0 0.0
    %650 = vmatprep.subr.mxu0 0.0
    %651 = vmatpush1.msra.mxu0 0.0
    %652 = vmatprep.subr.mxu0 0.0
    %653 = vmatpush1.msra.mxu0 0.0
    %654 = vmatprep.subr.mxu0 0.0
    %655 = vmatpush1.msra.mxu0 0.0
    %656 = vmatprep.subr.mxu0 0.0
    %657 = vmatpush1.msra.mxu0 0.0
    %658 = vmatprep.subr.mxu0 0.0
    %659 = vmatpush1.msra.mxu0 0.0
    %660 = vmatprep.subr.mxu0 0.0
    %661 = vmatpush1.msra.mxu0 0.0
    %662 = vmatprep.subr.mxu0 0.0
    %663 = vmatpush1.msra.mxu0 %v630
    %664 = vmatprep.subr.mxu0 0.0
    %665 = vmatpush2.msra.mxu0 0.0
    %666 = vmatprep.subr.mxu0 0.0
    %667 = vmatpush2.msra.mxu0 0.0
    %668 = vmatprep.subr.mxu0 0.0
    %669 = vmatpush2.msra.mxu0 0.0
    %670 = vmatprep.subr.mxu0 0.0
    %671 = vmatpush2.msra.mxu0 0.0
    %672 = vmatprep.subr.mxu0 0.0
    %673 = vmatpush2.msra.mxu0 0.0
    %674 = vmatprep.subr.mxu0 0.0
    %675 = vmatpush2.msra.mxu0 0.0
    %676 = vmatprep.subr.mxu0 0.0
    %677 = vmatpush2.msra.mxu0 0.0
    %678 = vmatprep.subr.mxu0 0.0
    %679 = vmatpush2.msra.mxu0 0.0
    %680 = vmatprep.subr.mxu0 0.0
    %681 = vmatpush2.msra.mxu0 0.0
    %682 = vmatprep.subr.mxu0 0.0
    %683 = vmatpush2.msra.mxu0 0.0
    %684 = vmatprep.subr.mxu0 0.0
    %685 = vmatpush2.msra.mxu0 0.0
    %686 = vmatprep.subr.mxu0 0.0
    %687 = vmatpush2.msra.mxu0 0.0
    %688 = vmatprep.subr.mxu0 0.0
    %689 = vmatpush2.msra.mxu0 0.0
    %690 = vmatprep.subr.mxu0 0.0
    %691 = vmatpush2.msra.mxu0 0.0
    %692 = vmatprep.subr.mxu0 0.0
    %693 = vmatpush2.msra.mxu0 0.0
    %694 = vmatprep.subr.mxu0 0.0
    %695 = vmatpush2.msra.mxu0 0.0
    %696 = vmatprep.mubr.f32.mxu0 0.0
    %697 = vmatmul.mubr.f32.gmra.mxu0 %v68
    %v698 = vpop.f32.mrf.mxu0
    %v699 = vadd.f32 0.0, %v698
    %v700 = vpop.f32.mrf.mxu0
    %701 = vdwg.mxu0
    %702 = vmatprep.subr.mxu0 0.0
    %703 = vmatpush1.msra.mxu0 0.0
    %704 = vmatprep.subr.mxu0 0.0
    %705 = vmatpush1.msra.mxu0 0.0
    %706 = vmatprep.subr.mxu0 0.0
    %707 = vmatpush1.msra.mxu0 0.0
    %708 = vmatprep.subr.mxu0 0.0
    %709 = vmatpush1.msra.mxu0 0.0
    %710 = vmatprep.subr.mxu0 0.0
    %711 = vmatpush1.msra.mxu0 0.0
    %712 = vmatprep.subr.mxu0 0.0
    %713 = vmatpush1.msra.mxu0 0.0
    %714 = vmatprep.subr.mxu0 0.0
    %715 = vmatpush1.msra.mxu0 0.0
    %716 = vmatprep.subr.mxu0 0.0
    %717 = vmatpush1.msra.mxu0 0.0
    %718 = vmatprep.subr.mxu0 0.0
    %719 = vmatpush1.msra.mxu0 0.0
    %720 = vmatprep.subr.mxu0 0.0
    %721 = vmatpush1.msra.mxu0 0.0
    %722 = vmatprep.subr.mxu0 0.0
    %723 = vmatpush1.msra.mxu0 0.0
    %724 = vmatprep.subr.mxu0 0.0
    %725 = vmatpush1.msra.mxu0 0.0
    %726 = vmatprep.subr.mxu0 0.0
    %727 = vmatpush1.msra.mxu0 0.0
    %728 = vmatprep.subr.mxu0 0.0
    %729 = vmatpush1.msra.mxu0 0.0
    %730 = vmatprep.subr.mxu0 0.0
    %731 = vmatpush1.msra.mxu0 0.0
    %732 = vmatprep.subr.mxu0 0.0
    %733 = vmatpush1.msra.mxu0 %v631
    %734 = vmatprep.subr.mxu0 0.0
    %735 = vmatpush2.msra.mxu0 0.0
    %736 = vmatprep.subr.mxu0 0.0
    %737 = vmatpush2.msra.mxu0 0.0
    %738 = vmatprep.subr.mxu0 0.0
    %739 = vmatpush2.msra.mxu0 0.0
    %740 = vmatprep.subr.mxu0 0.0
    %741 = vmatpush2.msra.mxu0 0.0
    %742 = vmatprep.subr.mxu0 0.0
    %743 = vmatpush2.msra.mxu0 0.0
    %744 = vmatprep.subr.mxu0 0.0
    %745 = vmatpush2.msra.mxu0 0.0
    %746 = vmatprep.subr.mxu0 0.0
    %747 = vmatpush2.msra.mxu0 0.0
    %748 = vmatprep.subr.mxu0 0.0
    %749 = vmatpush2.msra.mxu0 0.0
    %750 = vmatprep.subr.mxu0 0.0
    %751 = vmatpush2.msra.mxu0 0.0
    %752 = vmatprep.subr.mxu0 0.0
    %753 = vmatpush2.msra.mxu0 0.0
    %754 = vmatprep.subr.mxu0 0.0
    %755 = vmatpush2.msra.mxu0 0.0
    %756 = vmatprep.subr.mxu0 0.0
    %757 = vmatpush2.msra.mxu0 0.0
    %758 = vmatprep.subr.mxu0 0.0
    %759 = vmatpush2.msra.mxu0 0.0
    %760 = vmatprep.subr.mxu0 0.0
    %761 = vmatpush2.msra.mxu0 0.0
    %762 = vmatprep.subr.mxu0 0.0
    %763 = vmatpush2.msra.mxu0 0.0
    %764 = vmatprep.subr.mxu0 0.0
    %765 = vmatpush2.msra.mxu0 0.0
    %766 = vmatprep.mubr.f32.mxu0 0.0
    %767 = vmatmul.mubr.f32.gmra.mxu0 %v141
    %v768 = vpop.f32.mrf.mxu0
    %v769 = vadd.f32 0.0, %v768
    %v770 = vpop.f32.mrf.mxu0
    %771 = vdwg.mxu0
    %v772 = vld [vmem:[%s4] sm:$0xff]
    %v773 = vld [vmem:[%s4 + $0x8] sm:$0xff]
    %v774 = vld [vmem:[%s4 + $0x10] sm:$0xff]
    %v775 = vld [vmem:[%s4 + $0x18] sm:$0xff]
    %v776 = vlaneseq
    %v777 = vshrl.u32 %v776, 7
    %v778 = vsub.s32 2, %v777
    %v779 = vrot.slane %v63, %v778
    %v781 = vsel %vm303, %v699, 0
    %v784 = vsel %vm303, %v769, 0
    %786 = vmatprep.subr.mxu0 0.0
    %787 = vmatpush1.msra.mxu0 0.0
    %788 = vmatprep.subr.mxu0 0.0
    %789 = vmatpush1.msra.mxu0 0.0
    %790 = vmatprep.subr.mxu0 0.0
    %791 = vmatpush1.msra.mxu0 0.0
    %792 = vmatprep.subr.mxu0 0.0
    %793 = vmatpush1.msra.mxu0 0.0
    %794 = vmatprep.subr.mxu0 0.0
    %795 = vmatpush1.msra.mxu0 0.0
    %796 = vmatprep.subr.mxu0 0.0
    %797 = vmatpush1.msra.mxu0 0.0
    %798 = vmatprep.subr.mxu0 0.0
    %799 = vmatpush1.msra.mxu0 0.0
    %800 = vmatprep.subr.mxu0 0.0
    %801 = vmatpush1.msra.mxu0 0.0
    %802 = vmatprep.subr.mxu0 0.0
    %803 = vmatpush1.msra.mxu0 0.0
    %804 = vmatprep.subr.mxu0 0.0
    %805 = vmatpush1.msra.mxu0 0.0
    %806 = vmatprep.subr.mxu0 0.0
    %807 = vmatpush1.msra.mxu0 0.0
    %808 = vmatprep.subr.mxu0 0.0
    %809 = vmatpush1.msra.mxu0 0.0
    %810 = vmatprep.subr.mxu0 0.0
    %811 = vmatpush1.msra.mxu0 %v775
    %812 = vmatprep.subr.mxu0 0.0
    %813 = vmatpush1.msra.mxu0 %v774
    %814 = vmatprep.subr.mxu0 0.0
    %815 = vmatpush1.msra.mxu0 %v773
    %816 = vmatprep.subr.mxu0 0.0
    %817 = vmatpush1.msra.mxu0 %v772
    %818 = vmatprep.subr.mxu0 0.0
    %819 = vmatpush2.msra.mxu0 0.0
    %820 = vmatprep.subr.mxu0 0.0
    %821 = vmatpush2.msra.mxu0 0.0
    %822 = vmatprep.subr.mxu0 0.0
    %823 = vmatpush2.msra.mxu0 0.0
    %824 = vmatprep.subr.mxu0 0.0
    %825 = vmatpush2.msra.mxu0 0.0
    %826 = vmatprep.subr.mxu0 0.0
    %827 = vmatpush2.msra.mxu0 0.0
    %828 = vmatprep.subr.mxu0 0.0
    %829 = vmatpush2.msra.mxu0 0.0
    %830 = vmatprep.subr.mxu0 0.0
    %831 = vmatpush2.msra.mxu0 0.0
    %832 = vmatprep.subr.mxu0 0.0
    %833 = vmatpush2.msra.mxu0 0.0
    %834 = vmatprep.subr.mxu0 0.0
    %835 = vmatpush2.msra.mxu0 0.0
    %836 = vmatprep.subr.mxu0 0.0
    %837 = vmatpush2.msra.mxu0 0.0
    %838 = vmatprep.subr.mxu0 0.0
    %839 = vmatpush2.msra.mxu0 0.0
    %840 = vmatprep.subr.mxu0 0.0
    %841 = vmatpush2.msra.mxu0 0.0
    %842 = vmatprep.subr.mxu0 0.0
    %843 = vmatpush2.msra.mxu0 0.0
    %844 = vmatprep.subr.mxu0 0.0
    %845 = vmatpush2.msra.mxu0 0.0
    %846 = vmatprep.subr.mxu0 0.0
    %847 = vmatpush2.msra.mxu0 0.0
    %848 = vmatprep.subr.mxu0 0.0
    %849 = vmatpush2.msra.mxu0 0.0
    %850 = vmatprep.mubr.f32.mxu0 0.0
    %851 = vmatmul.mubr.f32.gmra.mxu0 %v781
    %v852 = vpop.f32.mrf.mxu0
    %v853 = vadd.f32 %v779, %v852
    %v854 = vpop.f32.mrf.mxu0
    %855 = vmatprep.mubr.f32.mxu0 0.0
    %856 = vmatmul.mubr.f32.gmra.mxu0 %v784
    %v857 = vpop.f32.mrf.mxu0
    %v858 = vadd.f32 %v779, %v857
    %v859 = vpop.f32.mrf.mxu0
    %860 = vdwg.mxu0
    %v861 = vmul.f32 %v853, %v853
    %v862 = vmul.f32 %v858, %v858
    %v863 = vsel %vm219, %v861, 0.0
    %864 = vadd.xlane.f32.xlu0 %v863
    %v865 = vpop.xlane.xlu0 %864
    %v866 = vsel %vm219, %v862, 0.0
    %867 = vadd.xlane.f32.xlu0 %v866
    %v868 = vpop.xlane.xlu0 %867
    %v869 = vrsqrt.pop %v865
    %v870 = vmul.f32 %v865, %v869
    %vm871 = vcmp.eq.f32.partialorder %v865, inf
    %v872 = vsel %vm871, %v865, %v870
    %vm873 = vcmp.eq.f32.partialorder %v865, 0.0
    %v874 = vand.u32 %v865, 2147483648
    %v875 = vsel %vm873, %v874, %v872
    %v876 = vrsqrt.pop %v868
    %v877 = vmul.f32 %v868, %v876
    %vm878 = vcmp.eq.f32.partialorder %v868, inf
    %v879 = vsel %vm878, %v868, %v877
    %vm880 = vcmp.eq.f32.partialorder %v868, 0.0
    %v881 = vand.u32 %v868, 2147483648
    %v882 = vsel %vm880, %v881, %v879
    %v883 = vmax.f32 %v875, 1e-12
    %v884 = vmax.f32 %v882, 1e-12
    %v885 = vrcp.pop %v883
    %v886 = vrcp.pop %v884
    %v887 = vmul.f32 %v853, %v885
    %v888 = vmul.f32 %v858, %v886
    %889 = vst.msk [vmem:[#allocation7] sm:$0xff] %vm219, %v887
    %890 = vst.msk [vmem:[#allocation7 + $0x8] sm:$0xff] %vm219, %v888
    // Predicated region
    $region34: #{att_decoder_forward.1} parent=1 // pred_check
      _
    $region35: #{att_decoder_forward.1} parent=1 // pred_check_branch
      %892 = sbr.rel (0) target = $region37
    $region36: #{att_decoder_forward.1} parent=1 // pred_region
      %s894 = ssub.s32 256, 256
      %895 = vsyncadd [#allocation4], %s894
      %s896 = sshll.u32 [#allocation7], 4
      %s897 = int_to_ptr.vmem [resolvable:$true] %s896
      %902 = dma.vmem_to_hbm [thread:$0]  %s897, 256, %s6, [#allocation4], 128, 128, 8
    $region37: #{att_decoder_forward.1} parent=1 // pred_fallthru
      _
    // Predicated region
    $region38: #{att_decoder_forward.1} parent=1 // pred_check
      _
    $region39: #{att_decoder_forward.1} parent=1 // pred_check_branch
      %904 = sbr.rel (0) target = $region41
    $region40: #{att_decoder_forward.1} parent=1 // pred_region
      %905 = dma.done [#allocation4], 256
    $region41: #{att_decoder_forward.1} parent=1 // pred_fallthru
      _
    %906 = vsyncpa [#allocation3], 1
    %907 = vsyncpa [#allocation6], 1
    %908 = vsyncpa [#allocation4], 1

</llo_original>
